<compile_context>
chip_gen: v5e
topology: v5e:2x2
jax: 0.10.0
libtpu: 0.0.40
codegen_flags: <defaults>
</compile_context>

<pallas_src>
import functools

import jax
import jax.numpy as jnp
from jax.experimental import pallas as pl
from jax.experimental.pallas import tpu as pltpu


def _round_up(x, m):
    return ((x + m - 1) // m) * m


def _cdiv(a, b):
    return -(-a // b)


def _tpu_defaults():
    """Return (per-core VMEM bytes, is_multi_tensorcore_chip) with fallbacks."""
    kind = ""
    try:
        kind = jax.devices()[0].device_kind.lower()
    except Exception:
        pass
    multi_core = ("v7" in kind) or ("tpu7" in kind)      # v7x: 2 TCs per chip
    vmem_cap = (64 if multi_core else 128) * 1024 * 1024
    try:
        vmem_cap = int(pltpu.get_tpu_info().vmem_capacity_bytes)
    except Exception:
        pass
    if multi_core:
        # v7x VMEM is 64 MiB *per TensorCore*; never budget above that.
        vmem_cap = min(vmem_cap, 64 * 1024 * 1024)
    return vmem_cap, multi_core


def _contrastive_cls_loss_kernel(o1_ref, o2_ref, logits_ref, aux_ref, out_ref,
                                 *, margin, eps, n_total, scale_c, scale_ce):
    p = pl.program_id(0)            # parallel (per-TensorCore) slice
    i = pl.program_id(1)            # sequential row-tile sweep (reduction)
    steps = pl.num_programs(1)

    # Zero this slice's resident accumulator at the start of its sweep.
    @pl.when(i == 0)
    def _():
        out_ref[...] = jnp.zeros_like(out_ref)

    tile_n = o1_ref.shape[0]

    # Global row ids of this tile (unclamped), used to mask the ragged last
    # block and any clamped duplicate block.  jnp.where (not multiply) so
    # Inf/NaN garbage in out-of-bounds rows cannot produce NaN sums.
    base_row = (p * steps + i) * tile_n
    row_ids = base_row + jax.lax.broadcasted_iota(jnp.int32, (tile_n, 1), 0)
    valid = row_ids < n_total                                   # (tile_n, 1) bool

    # ---- contrastive term ----------------------------------------------
    o1 = o1_ref[...].astype(jnp.float32)                        # (tile_n, D)
    o2 = o2_ref[...].astype(jnp.float32)
    diff = o2 - o1
    distances = jnp.sum(diff * diff, axis=1, keepdims=True)     # (tile_n, 1)

    aux = aux_ref[...]                                          # (tile_n, 1) int32
    t = ((aux >> 30) & 1).astype(jnp.float32)                   # same-class flag
    labels = aux & ((1 << 30) - 1)                              # class label

    hinge = jnp.maximum(margin - jnp.sqrt(distances + eps), 0.0)
    per_pair = 0.5 * (t * distances + (1.0 - t) * hinge * hinge)

    # ---- classification term: cross-entropy (mean over the whole batch) --
    logits = logits_ref[...].astype(jnp.float32)                # (tile_n, C)
    c = logits.shape[1]
    m = jnp.max(logits, axis=1, keepdims=True)
    lse = jnp.log(jnp.sum(jnp.exp(logits - m), axis=1, keepdims=True)) + m
    class_ids = jax.lax.broadcasted_iota(jnp.int32, (tile_n, c), 1)
    correct = jnp.sum(jnp.where(class_ids == labels, logits, 0.0),
                      axis=1, keepdims=True)
    ce_row = lse - correct

    # One fused masked reduction; scales use the *global* N (static) so
    # tiling can't skew the mean normalization.
    per_row = per_pair * scale_c + ce_row * scale_ce
    out_ref[...] += jnp.sum(jnp.where(valid, per_row, 0.0))


def _choose_tile_n(n, d, c, o_itemsize, c_itemsize, budget_bytes, num_parallel,
                   mult):
    """Row tile from a VMEM byte budget (double-buffered inputs + temporaries)."""
    lanes = lambda x: _round_up(max(int(x), 1), 128)
    # double-buffered input streams (two embeddings, logits, packed aux) ...
    in_bytes = 2 * (2 * lanes(d) * o_itemsize + lanes(c) * c_itemsize
                    + lanes(1) * 4)
    # ... plus in-kernel f32/int32 temporaries (casts, exp, iota, where-select)
    tmp_bytes = (4 * lanes(c) + 3 * lanes(d)) * 4
    per_row = in_bytes + tmp_bytes
    tile = budget_bytes // per_row
    needed = _round_up(_cdiv(n, num_parallel), mult)   # don't over-size tiny N
    tile = min(tile, 8192, needed)
    return int(max(mult, (tile // mult) * mult))


def contrastive_classification_loss(output1, output2, c_output1, target, label1,
                                    *, margin=1.0, size_average=True,
                                    tile_n=None, num_parallel=None,
                                    core_parallel=None):
    """JAX/Pallas equivalent of ContrastiveClassificationLoss.forward with
    c_loss == nn.CrossEntropyLoss (mean reduction).

    Tips: pass bf16 embeddings/logits to halve HBM traffic (all reductions are
    f32 in-kernel).  num_parallel / core_parallel default to engaging both
    TensorCores on v7x and a single core on v5e/v6e.
    """
    n, d = output1.shape
    c = c_output1.shape[1]

    vmem_cap, multi_core = _tpu_defaults()
    vmem_limit = (vmem_cap * 3) // 4      # 96 MiB on v5e/v6e, 48 MiB on v7x
    budget = vmem_limit // 2              # working set: inputs + temporaries

    if num_parallel is None:
        num_parallel = 2 if multi_core else 1
    num_parallel = max(1, int(num_parallel))

    # Sublane multiple: 16 covers bf16 (16,128) tiling, 8 suffices for 32-bit.
    mult = 16 if (jnp.dtype(output1.dtype).itemsize < 4
                  or jnp.dtype(c_output1.dtype).itemsize < 4) else 8

    if tile_n is None:
        tile_n = _choose_tile_n(n, d, c,
                                jnp.dtype(output1.dtype).itemsize,
                                jnp.dtype(c_output1.dtype).itemsize,
                                budget, num_parallel, mult)
    tile_n = max(mult, _round_up(int(tile_n), mult))

    num_blocks = _cdiv(n, tile_n)
    num_parallel = max(1, min(num_parallel, num_blocks))
    steps = _cdiv(num_blocks, num_parallel)
    grid = (num_parallel, steps)

    # target/label packed into a single int32 column: bit 30 = same-class
    # flag, low 30 bits = class label -> one lane-tile aux stream.
    aux = ((label1.astype(jnp.int32) & ((1 << 30) - 1))
           | (target.astype(jnp.int32) << 30))[:, None]

    # No padding of the big inputs.  Block indices past the last real block
    # (possible when the parallel split doesn't divide num_blocks) are clamped
    # here and fully masked in-kernel via the unclamped global row id.
    def row_map(p, i):
        return (jnp.minimum(p * steps + i, num_blocks - 1), 0)

    kernel = functools.partial(
        _contrastive_cls_loss_kernel,
        margin=float(margin), eps=1e-9, n_total=int(n),
        scale_c=(1.0 / n if size_average else 1.0),  # contrastive: mean or sum
        scale_ce=1.0 / n)                            # CE: CrossEntropyLoss mean
    # TODO(synk): add an online-softmax inner loop over C for vocab-scale class
    # counts; current path keeps the full (tile_n, C) logits block in VMEM.

    def _call(leading_sem):
        return pl.pallas_call(
            kernel,
            out_shape=jax.ShapeDtypeStruct((num_parallel, 8, 128), jnp.float32),
            grid=grid,
            in_specs=[pl.BlockSpec((tile_n, d), row_map),
                      pl.BlockSpec((tile_n, d), row_map),
                      pl.BlockSpec((tile_n, c), row_map),
                      pl.BlockSpec((tile_n, 1), row_map)],
            out_specs=pl.BlockSpec((1, 8, 128), lambda p, i: (p, 0, 0)),
            compiler_params=pltpu.CompilerParams(
                dimension_semantics=(leading_sem, "arbitrary"),
                vmem_limit_bytes=int(vmem_limit)),
        )(output1, output2, c_output1, aux)

    if core_parallel is None:
        core_parallel = bool(multi_core and num_parallel > 1)
    if core_parallel:
        try:
            out = _call(getattr(pltpu, "CORE_PARALLEL", "parallel"))
        except Exception:
            out = _call("parallel")   # graceful fallback (eager call path)
    else:
        out = _call("parallel")

    # Each parallel slice wrote its partial sum (broadcast across its block).
    return jnp.sum(out[:, 0, 0])


def _reference(output1, output2, c_output1, target, label1, margin,
               size_average=True):
    """Pure-JAX reference mirroring the PyTorch forward (c_loss = CE mean)."""
    eps = 1e-9
    o1 = output1.astype(jnp.float32)
    o2 = output2.astype(jnp.float32)
    distances = jnp.sum((o2 - o1) ** 2, axis=1)
    tf = target.astype(jnp.float32)
    losses = 0.5 * (tf * distances
                    + (1.0 - tf) * jax.nn.relu(margin - jnp.sqrt(distances + eps)) ** 2)
    logp = jax.nn.log_softmax(c_output1.astype(jnp.float32), axis=1)
    ce = -jnp.mean(jnp.take_along_axis(logp, label1[:, None], axis=1))
    red = jnp.mean(losses) if size_average else jnp.sum(losses)
    return red + ce


if __name__ == "__main__":
    keys = jax.random.split(jax.random.PRNGKey(0), 4)

    def make_inputs(key, n, d, c, dtype=jnp.float32):
        k1, k2, k3, k4, k5 = jax.random.split(key, 5)
        output1 = jax.random.normal(k1, (n, d), dtype=jnp.float32).astype(dtype)
        output2 = jax.random.normal(k2, (n, d), dtype=jnp.float32).astype(dtype)
        c_output1 = jax.random.normal(k3, (n, c), dtype=jnp.float32).astype(dtype)
        target = jax.random.bernoulli(k4, 0.5, (n,)).astype(jnp.int32)
        label1 = jax.random.randint(k5, (n,), 0, c, dtype=jnp.int32)
        return output1, output2, c_output1, target, label1

    # 1) module-docstring shapes (embeddings n x 2), single auto-sized tile.
    args = make_inputs(keys[0], 8, 2, 4)
    loss = jax.block_until_ready(
        contrastive_classification_loss(*args, margin=1.0, size_average=True))
    ref = _reference(*args, margin=1.0, size_average=True)
    assert jnp.allclose(loss, ref, rtol=1e-3, atol=1e-2), (loss, ref)

    # 2) multi-step grid with a ragged last tile (no wrapper pad, in-kernel mask).
    args = make_inputs(keys[1], 300, 16, 10)
    loss = jax.block_until_ready(
        contrastive_classification_loss(*args, margin=1.0, size_average=True,
                                        tile_n=64))
    ref = _reference(*args, margin=1.0, size_average=True)
    assert jnp.allclose(loss, ref, rtol=1e-3, atol=1e-2), (loss, ref)

    # 3) two-way parallel split with an odd block count (exercises the clamped
    #    duplicate-block path) + size_average=False.
    args = make_inputs(keys[2], 300, 16, 10)
    loss = jax.block_until_ready(
        contrastive_classification_loss(*args, margin=1.0, size_average=False,
                                        tile_n=48, num_parallel=2))
    ref = _reference(*args, margin=1.0, size_average=False)
    assert jnp.allclose(loss, ref, rtol=1e-3, atol=1e-2), (loss, ref)

    # 4) bf16 inputs (halved HBM traffic; f32 math in-kernel), auto tiling.
    args = make_inputs(keys[3], 200, 16, 10, dtype=jnp.bfloat16)
    loss = jax.block_until_ready(
        contrastive_classification_loss(*args, margin=1.0, size_average=True))
    ref = _reference(*args, margin=1.0, size_average=True)
    assert jnp.allclose(loss, ref, rtol=1e-3, atol=1e-2), (loss, ref)

    print("KERNEL_OK")
</pallas_src>

<mosaic_0001>
module attributes {stable_mosaic.version = 11 : i64} {
  func.func @_contrastive_cls_loss_kernel(%arg0: i32, %arg1: i32, %arg2: memref<8x2xf32, #tpu.memory_space<vmem>>, %arg3: memref<8x2xf32, #tpu.memory_space<vmem>>, %arg4: memref<8x4xf32, #tpu.memory_space<vmem>>, %arg5: memref<8x1xi32, #tpu.memory_space<vmem>>, %arg6: memref<1x8x128xf32, #tpu.memory_space<vmem>>) attributes {dimension_semantics = [#tpu.dimension_semantics<parallel>, #tpu.dimension_semantics<arbitrary>], iteration_bounds = array<i64: 1, 1>, scalar_prefetch = 0 : i64, scratch_operands = 0 : i64, tpu.core_type = #tpu.core_type<tc>, window_params = [{transform_indices = @transform_0, window_bounds = array<i64: 8, 2>}, {transform_indices = @transform_1, window_bounds = array<i64: 8, 2>}, {transform_indices = @transform_2, window_bounds = array<i64: 8, 4>}, {transform_indices = @transform_3, window_bounds = array<i64: 8, 1>}, {transform_indices = @transform_4, window_bounds = array<i64: 1, 8, 128>}]} {
    %c0_i32 = arith.constant 0 : i32
    %0 = arith.cmpi eq, %arg1, %c0_i32 : i32
    %1 = arith.extui %0 : i1 to i32
    %c0_i32_0 = arith.constant 0 : i32
    %2 = arith.cmpi ne, %1, %c0_i32_0 : i32
    scf.if %2 {
      %cst_29 = arith.constant 0.000000e+00 : f32
      %73 = vector.broadcast %cst_29 : f32 to vector<1x8x128xf32>
      %c0_30 = arith.constant 0 : index
      %c0_31 = arith.constant 0 : index
      %c0_32 = arith.constant 0 : index
      %74 = vector.load %arg6[%c0_30, %c0_31, %c0_32] : memref<1x8x128xf32, #tpu.memory_space<vmem>>, vector<1x8x128xf32>
      tpu.vector_store %arg6[%c0_30, %c0_31, %c0_32], %73 {strides = array<i32>} : memref<1x8x128xf32, #tpu.memory_space<vmem>>, vector<1x8x128xf32>,
    } else {
    }
    %c1_i32 = arith.constant 1 : i32
    %3 = arith.muli %arg0, %c1_i32 : i32
    %4 = arith.addi %3, %arg1 : i32
    %c8_i32 = arith.constant 8 : i32
    %5 = arith.muli %4, %c8_i32 : i32
    %6 = tpu.iota {dimensions = array<i32: 0>} : vector<8x1xi32>
    %7 = vector.broadcast %5 : i32 to vector<8x1xi32>
    %8 = arith.addi %7, %6 : vector<8x1xi32>
    %c8_i32_1 = arith.constant 8 : i32
    %9 = vector.broadcast %c8_i32_1 : i32 to vector<8x1xi32>
    %10 = arith.cmpi slt, %8, %9 : vector<8x1xi32>
    %c0 = arith.constant 0 : index
    %c0_2 = arith.constant 0 : index
    %11 = vector.load %arg2[%c0, %c0_2] : memref<8x2xf32, #tpu.memory_space<vmem>>, vector<8x2xf32>
    %c0_3 = arith.constant 0 : index
    %c0_4 = arith.constant 0 : index
    %12 = vector.load %arg3[%c0_3, %c0_4] : memref<8x2xf32, #tpu.memory_space<vmem>>, vector<8x2xf32>
    %13 = arith.subf %12, %11 : vector<8x2xf32>
    %14 = arith.mulf %13, %13 : vector<8x2xf32>
    %cst = arith.constant dense<0.000000e+00> : vector<8xf32>
    %15 = vector.multi_reduction <add>, %14, %cst [1] : vector<8x2xf32> to vector<8xf32>
    %16 = vector.shape_cast %15 : vector<8xf32> to vector<8x1xf32>
    %c0_5 = arith.constant 0 : index
    %c0_6 = arith.constant 0 : index
    %17 = vector.load %arg5[%c0_5, %c0_6] : memref<8x1xi32, #tpu.memory_space<vmem>>, vector<8x1xi32>
    %c30_i32 = arith.constant 30 : i32
    %18 = vector.broadcast %c30_i32 : i32 to vector<8x1xi32>
    %19 = arith.shrsi %17, %18 : vector<8x1xi32>
    %c1_i32_7 = arith.constant 1 : i32
    %20 = vector.broadcast %c1_i32_7 : i32 to vector<8x1xi32>
    %21 = arith.andi %19, %20 : vector<8x1xi32>
    %22 = arith.sitofp %21 : vector<8x1xi32> to vector<8x1xf32>
    %c1073741823_i32 = arith.constant 1073741823 : i32
    %23 = vector.broadcast %c1073741823_i32 : i32 to vector<8x1xi32>
    %24 = arith.andi %17, %23 : vector<8x1xi32>
    %cst_8 = arith.constant 9.99999971E-10 : f32
    %25 = vector.broadcast %cst_8 : f32 to vector<8x1xf32>
    %26 = arith.addf %16, %25 : vector<8x1xf32>
    %27 = math.sqrt %26 : vector<8x1xf32>
    %cst_9 = arith.constant 1.000000e+00 : f32
    %28 = vector.broadcast %cst_9 : f32 to vector<8x1xf32>
    %29 = arith.subf %28, %27 : vector<8x1xf32>
    %cst_10 = arith.constant 0.000000e+00 : f32
    %30 = vector.broadcast %cst_10 : f32 to vector<8x1xf32>
    %31 = arith.maximumf %29, %30 : vector<8x1xf32>
    %32 = arith.mulf %22, %16 : vector<8x1xf32>
    %cst_11 = arith.constant 1.000000e+00 : f32
    %33 = vector.broadcast %cst_11 : f32 to vector<8x1xf32>
    %34 = arith.subf %33, %22 : vector<8x1xf32>
    %35 = arith.mulf %34, %31 : vector<8x1xf32>
    %36 = arith.mulf %35, %31 : vector<8x1xf32>
    %37 = arith.addf %32, %36 : vector<8x1xf32>
    %cst_12 = arith.constant 5.000000e-01 : f32
    %38 = vector.broadcast %cst_12 : f32 to vector<8x1xf32>
    %39 = arith.mulf %38, %37 : vector<8x1xf32>
    %c0_13 = arith.constant 0 : index
    %c0_14 = arith.constant 0 : index
    %40 = vector.load %arg4[%c0_13, %c0_14] : memref<8x4xf32, #tpu.memory_space<vmem>>, vector<8x4xf32>
    %cst_15 = arith.constant dense<0xFF800000> : vector<8xf32>
    %41 = vector.multi_reduction <maximumf>, %40, %cst_15 [1] : vector<8x4xf32> to vector<8xf32>
    %42 = vector.shape_cast %41 : vector<8xf32> to vector<8x1xf32>
    %43 = vector.broadcast %42 : vector<8x1xf32> to vector<8x4xf32>
    %44 = arith.subf %40, %43 : vector<8x4xf32>
    %45 = math.exp %44 : vector<8x4xf32>
    %cst_16 = arith.constant dense<0.000000e+00> : vector<8xf32>
    %46 = vector.multi_reduction <add>, %45, %cst_16 [1] : vector<8x4xf32> to vector<8xf32>
    %47 = vector.shape_cast %46 : vector<8xf32> to vector<8x1xf32>
    %48 = math.log %47 : vector<8x1xf32>
    %49 = arith.addf %48, %42 : vector<8x1xf32>
    %50 = tpu.iota {dimensions = array<i32: 1>} : vector<8x4xi32>
    %51 = vector.broadcast %24 : vector<8x1xi32> to vector<8x4xi32>
    %52 = arith.cmpi eq, %50, %51 : vector<8x4xi32>
    %cst_17 = arith.constant 0.000000e+00 : f32
    %53 = vector.broadcast %cst_17 : f32 to vector<8x4xf32>
    %54 = arith.select %52, %40, %53 : vector<8x4xi1>, vector<8x4xf32>
    %cst_18 = arith.constant dense<0.000000e+00> : vector<8xf32>
    %55 = vector.multi_reduction <add>, %54, %cst_18 [1] : vector<8x4xf32> to vector<8xf32>
    %56 = vector.shape_cast %55 : vector<8xf32> to vector<8x1xf32>
    %57 = arith.subf %49, %56 : vector<8x1xf32>
    %cst_19 = arith.constant 1.250000e-01 : f32
    %58 = vector.broadcast %cst_19 : f32 to vector<8x1xf32>
    %59 = arith.mulf %39, %58 : vector<8x1xf32>
    %cst_20 = arith.constant 1.250000e-01 : f32
    %60 = vector.broadcast %cst_20 : f32 to vector<8x1xf32>
    %61 = arith.mulf %57, %60 : vector<8x1xf32>
    %62 = arith.addf %59, %61 : vector<8x1xf32>
    %c0_21 = arith.constant 0 : index
    %c0_22 = arith.constant 0 : index
    %c0_23 = arith.constant 0 : index
    %63 = vector.load %arg6[%c0_21, %c0_22, %c0_23] : memref<1x8x128xf32, #tpu.memory_space<vmem>>, vector<1x8x128xf32>
    %cst_24 = arith.constant 0.000000e+00 : f32
    %64 = vector.broadcast %cst_24 : f32 to vector<8x1xf32>
    %65 = arith.select %10, %62, %64 : vector<8x1xi1>, vector<8x1xf32>
    %66 = vector.shape_cast %65 : vector<8x1xf32> to vector<1x8x1xf32>
    %cst_25 = arith.constant dense<0.000000e+00> : vector<1xf32>
    %67 = vector.multi_reduction <add>, %66, %cst_25 [1, 2] : vector<1x8x1xf32> to vector<1xf32>
    %68 = vector.shape_cast %67 : vector<1xf32> to vector<1x1x1xf32>
    %69 = vector.extract %68[0, 0, 0] : f32 from vector<1x1x1xf32>
    %70 = vector.broadcast %69 : f32 to vector<1x8x128xf32>
    %71 = arith.addf %63, %70 : vector<1x8x128xf32>
    %c0_26 = arith.constant 0 : index
    %c0_27 = arith.constant 0 : index
    %c0_28 = arith.constant 0 : index
    %72 = vector.load %arg6[%c0_26, %c0_27, %c0_28] : memref<1x8x128xf32, #tpu.memory_space<vmem>>, vector<1x8x128xf32>
    tpu.vector_store %arg6[%c0_26, %c0_27, %c0_28], %71 {strides = array<i32>} : memref<1x8x128xf32, #tpu.memory_space<vmem>>, vector<1x8x128xf32>,
    return
  }
  func.func @transform_0(%arg0: i32, %arg1: i32) -> (i32, i32) {
    %c1_i32 = arith.constant 1 : i32
    %0 = arith.muli %arg0, %c1_i32 : i32
    %1 = arith.addi %0, %arg1 : i32
    %c0_i32 = arith.constant 0 : i32
    %2 = arith.minsi %1, %c0_i32 : i32
    %c0_i32_0 = arith.constant 0 : i32
    %c0_i32_1 = arith.constant 0 : i32
    return %2, %c0_i32_0 : i32, i32
  }
  func.func @transform_1(%arg0: i32, %arg1: i32) -> (i32, i32) {
    %c1_i32 = arith.constant 1 : i32
    %0 = arith.muli %arg0, %c1_i32 : i32
    %1 = arith.addi %0, %arg1 : i32
    %c0_i32 = arith.constant 0 : i32
    %2 = arith.minsi %1, %c0_i32 : i32
    %c0_i32_0 = arith.constant 0 : i32
    %c0_i32_1 = arith.constant 0 : i32
    return %2, %c0_i32_0 : i32, i32
  }
  func.func @transform_2(%arg0: i32, %arg1: i32) -> (i32, i32) {
    %c1_i32 = arith.constant 1 : i32
    %0 = arith.muli %arg0, %c1_i32 : i32
    %1 = arith.addi %0, %arg1 : i32
    %c0_i32 = arith.constant 0 : i32
    %2 = arith.minsi %1, %c0_i32 : i32
    %c0_i32_0 = arith.constant 0 : i32
    %c0_i32_1 = arith.constant 0 : i32
    return %2, %c0_i32_0 : i32, i32
  }
  func.func @transform_3(%arg0: i32, %arg1: i32) -> (i32, i32) {
    %c1_i32 = arith.constant 1 : i32
    %0 = arith.muli %arg0, %c1_i32 : i32
    %1 = arith.addi %0, %arg1 : i32
    %c0_i32 = arith.constant 0 : i32
    %2 = arith.minsi %1, %c0_i32 : i32
    %c0_i32_0 = arith.constant 0 : i32
    %c0_i32_1 = arith.constant 0 : i32
    return %2, %c0_i32_0 : i32, i32
  }
  func.func @transform_4(%arg0: i32, %arg1: i32) -> (i32, i32, i32) {
    %c0_i32 = arith.constant 0 : i32
    %c0_i32_0 = arith.constant 0 : i32
    %c0_i32_1 = arith.constant 0 : i32
    return %arg0, %c0_i32, %c0_i32_0 : i32, i32, i32
  }
}

</mosaic_0001>

<llo_original>
// kernel: tpu_custom_call.1
$region0: #{tpu_custom_call.1}
  #allocation0 [shape = 'u32[]', space=smem, size = 0x4, offset = 0x4, fixed_abs, tag = 'smem constant byte address 0x4 - core index']
  #allocation1 [shape = 'u32[72,128]{1,0:T(1,128)}', space=vmem, size = 0x9000, scoped, tag = 'internal scratch']
  %s0 = inlined_call_operand.vmem [shape: f32[8,2], index: 0, kind: input, shape index: {}]
  %s1 = inlined_call_operand.vmem [shape: f32[8,2], index: 1, kind: input, shape index: {}]
  %s2 = inlined_call_operand.vmem [shape: f32[8,4], index: 2, kind: input, shape index: {}]
  %s3 = inlined_call_operand.vmem [shape: s32[8,1], index: 3, kind: input, shape index: {}]
  %s4 = inlined_call_operand.hbm [shape: f32[1,8,128], index: 4, kind: output, shape index: {}]
  %s5 = sld [smem:[#allocation0]]
  $region30: #{tpu_custom_call.1} parent=0
    _
  %s7 = ssub.s32 1, %s5
  %s8 = scalar_select 0, %s7, %s5
  $region1: #{tpu_custom_call.1} parent=0
    #allocation2 [shape = 'u8[4096]{0}', space=vmem, size = 0x1000, scoped, tag = 'output window, operand 0, single buffered']
    #allocation3 [shape = 's32[1]{0}', space=sflag, size = 0x4, scoped, tag = 'scoped memory for tpu_custom_call.1']
    %9 = vsyncpa [#allocation3], 0
    // Predicated region
    $region2: #{tpu_custom_call.1} parent=1 // pred_check
      _
    $region3: #{tpu_custom_call.1} parent=1 // pred_check_branch
      %11 = sbr.rel (0) target = $region5
    $region4: #{tpu_custom_call.1} parent=1 // pred_region
      %s12 = sadd.s32 0, 0
      %p13 = scmp.lt.s32.totalorder %s12, 0
      %s14 = scalar_select %p13, %s12, 0
      %p15 = scmp.lt.s32.totalorder %s14, 0
      %s16 = scalar_select %p15, %s14, 0
      %s17 = smul.addr %s16, 8
      %s18 = scalar_lea.vmem %s0, %s17
      %s19 = sadd.s32 0, 0
      %p20 = scmp.lt.s32.totalorder %s19, 0
      %s21 = scalar_select %p20, %s19, 0
    $region5: #{tpu_custom_call.1} parent=1 // pred_fallthru
      _
    // Predicated region
    $region6: #{tpu_custom_call.1} parent=1 // pred_check
      _
    $region7: #{tpu_custom_call.1} parent=1 // pred_check_branch
      %23 = sbr.rel (0) target = $region9
    $region8: #{tpu_custom_call.1} parent=1 // pred_region
      %s24 = sadd.s32 0, 0
      %p25 = scmp.lt.s32.totalorder %s24, 0
      %s26 = scalar_select %p25, %s24, 0
      %p27 = scmp.lt.s32.totalorder %s26, 0
      %s28 = scalar_select %p27, %s26, 0
      %s29 = smul.addr %s28, 8
      %s30 = scalar_lea.vmem %s1, %s29
      %s31 = sadd.s32 0, 0
      %p32 = scmp.lt.s32.totalorder %s31, 0
      %s33 = scalar_select %p32, %s31, 0
    $region9: #{tpu_custom_call.1} parent=1 // pred_fallthru
      _
    // Predicated region
    $region10: #{tpu_custom_call.1} parent=1 // pred_check
      _
    $region11: #{tpu_custom_call.1} parent=1 // pred_check_branch
      %35 = sbr.rel (0) target = $region13
    $region12: #{tpu_custom_call.1} parent=1 // pred_region
      %s36 = sadd.s32 0, 0
      %p37 = scmp.lt.s32.totalorder %s36, 0
      %s38 = scalar_select %p37, %s36, 0
      %p39 = scmp.lt.s32.totalorder %s38, 0
      %s40 = scalar_select %p39, %s38, 0
      %s41 = smul.addr %s40, 8
      %s42 = scalar_lea.vmem %s2, %s41
      %s43 = sadd.s32 0, 0
      %p44 = scmp.lt.s32.totalorder %s43, 0
      %s45 = scalar_select %p44, %s43, 0
    $region13: #{tpu_custom_call.1} parent=1 // pred_fallthru
      _
    // Predicated region
    $region14: #{tpu_custom_call.1} parent=1 // pred_check
      _
    $region15: #{tpu_custom_call.1} parent=1 // pred_check_branch
      %47 = sbr.rel (0) target = $region17
    $region16: #{tpu_custom_call.1} parent=1 // pred_region
      %s48 = sadd.s32 0, 0
      %p49 = scmp.lt.s32.totalorder %s48, 0
      %s50 = scalar_select %p49, %s48, 0
      %p51 = scmp.lt.s32.totalorder %s50, 0
      %s52 = scalar_select %p51, %s50, 0
      %s53 = smul.addr %s52, 8
      %s54 = scalar_lea.vmem %s3, %s53
      %s55 = sadd.s32 0, 0
      %p56 = scmp.lt.s32.totalorder %s55, 0
      %s57 = scalar_select %p56, %s55, 0
    $region17: #{tpu_custom_call.1} parent=1 // pred_fallthru
      _
    %s58 = sadd.s32 0, 0
    %p59 = scmp.lt.s32.totalorder %s58, 0
    %s60 = scalar_select %p59, %s58, 0
    %p61 = scmp.lt.s32.totalorder %s60, 0
    %s62 = scalar_select %p61, %s60, 0
    %s63 = smul.addr %s62, 8
    %s64 = scalar_lea.vmem %s0, %s63
    %s65 = sadd.s32 0, 0
    %p66 = scmp.lt.s32.totalorder %s65, 0
    %s67 = scalar_select %p66, %s65, 0
    %p68 = scmp.lt.s32.totalorder %s67, 0
    %s69 = scalar_select %p68, %s67, 0
    %s70 = smul.addr %s69, 8
    %s71 = scalar_lea.vmem %s1, %s70
    %s72 = sadd.s32 0, 0
    %p73 = scmp.lt.s32.totalorder %s72, 0
    %s74 = scalar_select %p73, %s72, 0
    %p75 = scmp.lt.s32.totalorder %s74, 0
    %s76 = scalar_select %p75, %s74, 0
    %s77 = smul.addr %s76, 8
    %s78 = scalar_lea.vmem %s2, %s77
    %s79 = sadd.s32 0, 0
    %p80 = scmp.lt.s32.totalorder %s79, 0
    %s81 = scalar_select %p80, %s79, 0
    %p82 = scmp.lt.s32.totalorder %s81, 0
    %s83 = scalar_select %p82, %s81, 0
    %s84 = smul.addr %s83, 8
    %s85 = scalar_lea.vmem %s3, %s84
    %s86 = sadd.s32 0, 0
    %p87 = scmp.lt.s32.totalorder %s86, 0
    %s88 = scalar_select %p87, %s86, 0
    %p89 = scmp.lt.s32.totalorder %s88, 0
    %s90 = scalar_select %p89, %s88, 0
    %s91 = smul.addr %s90, 8
    %s92 = scalar_lea.vmem %s0, %s91
    %s93 = sadd.s32 0, 0
    %p94 = scmp.lt.s32.totalorder %s93, 0
    %s95 = scalar_select %p94, %s93, 0
    %s96 = sadd.s32 0, 0
    %p97 = scmp.lt.s32.totalorder %s96, 0
    %s98 = scalar_select %p97, %s96, 0
    %p99 = scmp.lt.s32.totalorder %s98, 0
    %s100 = scalar_select %p99, %s98, 0
    %s101 = smul.addr %s100, 8
    %s102 = scalar_lea.vmem %s1, %s101
    %s103 = sadd.s32 0, 0
    %p104 = scmp.lt.s32.totalorder %s103, 0
    %s105 = scalar_select %p104, %s103, 0
    %s106 = sadd.s32 0, 0
    %p107 = scmp.lt.s32.totalorder %s106, 0
    %s108 = scalar_select %p107, %s106, 0
    %p109 = scmp.lt.s32.totalorder %s108, 0
    %s110 = scalar_select %p109, %s108, 0
    %s111 = smul.addr %s110, 8
    %s112 = scalar_lea.vmem %s2, %s111
    %s113 = sadd.s32 0, 0
    %p114 = scmp.lt.s32.totalorder %s113, 0
    %s115 = scalar_select %p114, %s113, 0
    %s116 = sadd.s32 0, 0
    %p117 = scmp.lt.s32.totalorder %s116, 0
    %s118 = scalar_select %p117, %s116, 0
    %p119 = scmp.lt.s32.totalorder %s118, 0
    %s120 = scalar_select %p119, %s118, 0
    %s121 = smul.addr %s120, 8
    %s122 = scalar_lea.vmem %s3, %s121
    %s123 = sadd.s32 0, 0
    %p124 = scmp.lt.s32.totalorder %s123, 0
    %s125 = scalar_select %p124, %s123, 0
    %p126 = scmp.eq.s32.totalorder 0, 0
    // Predicated region
    $region18: #{tpu_custom_call.1} parent=1 // pred_check
      %p127 = pneg %p126
    $region19: #{tpu_custom_call.1} parent=1 // pred_check_branch
      %129 = sbr.rel (%p127) target = $region21
    $region20: #{tpu_custom_call.1} parent=1 // pred_region
      %130 = vst [vmem:[#allocation2] sm:$0xff] 0.0
    $region21: #{tpu_custom_call.1} parent=1 // pred_fallthru
      _
    %s131 = sadd.s32 0, 0
    %s132 = smul.u32 %s131, 8
    %v133 = vlaneseq
    %v134 = vshrl.u32 %v133, 7
    %v135 = vstv %s132
    %v136 = vadd.s32 %v135, %v134
    %vm137 = vcmp.lt.s32.totalorder %v136, 8
    %v138 = vld [vmem:[%s92] sm:$0xff]
    %v139 = vld [vmem:[%s102] sm:$0xff]
    %v140 = vsub.f32 %v139, %v138
    %v141 = vmul.f32 %v140, %v140
    %vm142 = vcmask 15360
    %v143 = vsel %vm142, %v141, 0.0
    %144 = vadd.xlane.f32.xlu0 %v143
    %v145 = vpop.xlane.xlu0 %144
    %v146 = vld [vmem:[%s122] sm:$0xff]
    %v147 = vshra.s32 %v146, 30
    %v148 = vand.u32 %v147, 1
    %v149 = vcvt.s32.f32 %v148
    %v150 = vand.u32 %v146, 1073741823
    %v151 = vadd.f32 %v145, 1e-09
    %v152 = vrsqrt.pop %v151
    %v153 = vmul.f32 %v152, %v151
    %v154 = vmul.f32 %v153, %v152
    %v155 = vmul.f32 0.5, %v154
    %v156 = vsub.f32 1.5, %v155
    %v157 = vmul.f32 %v152, %v156
    %v158 = vmul.f32 %v151, %v157
    %vm159 = vcmp.eq.f32.partialorder %v151, inf
    %v160 = vsel %vm159, %v151, %v158
    %vm161 = vcmp.eq.f32.partialorder %v151, 0.0
    %v162 = vand.u32 %v151, 2147483648
    %v163 = vsel %vm161, %v162, %v160
    %v164 = vsub.f32 1.0, %v163
    %v165 = vmax.f32 %v164, 0.0
    %v166 = vmul.f32 %v149, %v145
    %v167 = vsub.f32 1.0, %v149
    %v168 = vmul.f32 %v167, %v165
    %v169 = vmul.f32 %v168, %v165
    %v170 = vadd.f32 %v166, %v169
    %v171 = vmul.f32 %v170, 0.5
    %v172 = vld [vmem:[%s112] sm:$0xff]
    %vm173 = vcmask 31744
    %v174 = vsel %vm173, %v172, -inf
    %175 = vmax.xlane.f32.xlu0 %v174
    %v176 = vpop.xlane.xlu0 %175
    %v177 = vsub.f32 %v172, %v176
    %v178 = vmul.f32 %v177, 1.442695
    %v179 = vpow.pop %v178
    %v180 = vsel %vm173, %v179, 0.0
    %181 = vadd.xlane.f32.xlu0 %v180
    %v182 = vpop.xlane.xlu0 %181
    %v183 = vlog2.pop %v182
    %v184 = vmul.f32 %v183, 0.6931472
    %v185 = vadd.f32 %v184, %v176
    %v186 = vlaneseq
    %v187 = vand.u32 %v186, 127
    %188 = vset.pattern.permute.xlu0 0
    %189 = vperm.xlu0 %188, %v150
    %v190 = vpop.permute.xlu0 %189
    %vm191 = vcmp.eq.s32.totalorder %v187, %v190
    %v192 = vsel %vm191, %v172, 0.0
    %v193 = vsel %vm173, %v192, 0.0
    %194 = vadd.xlane.f32.xlu0 %v193
    %v195 = vpop.xlane.xlu0 %194
    %v196 = vsub.f32 %v185, %v195
    %v197 = vmul.f32 %v171, 0.125
    %v198 = vmul.f32 %v196, 0.125
    %v199 = vadd.f32 %v197, %v198
    %v200 = vld [vmem:[#allocation2] sm:$0xff]
    %v201 = vsel %vm137, %v199, 0.0
    %vm202 = vcmask 7168
    %v203 = vsel %vm202, %v201, 0.0
    %204 = vadd.xlane.f32.xlu0 %v203
    %v205 = vpop.xlane.xlu0 %204
    %v206 = vrot.slane %v205, 4
    %v207 = vadd.f32 %v205, %v206
    %v208 = vrot.slane %v207, 2
    %v209 = vadd.f32 %v207, %v208
    %v210 = vrot.slane %v209, 1
    %v211 = vadd.f32 %v209, %v210
    %s212 = vtos %v211
    %v213 = vstv %s212
    %v214 = vadd.f32 %v200, %v213
    %215 = vst [vmem:[#allocation2] sm:$0xff] %v214
    // Predicated region
    $region22: #{tpu_custom_call.1} parent=1 // pred_check
      _
    $region23: #{tpu_custom_call.1} parent=1 // pred_check_branch
      %217 = sbr.rel (0) target = $region25
    $region24: #{tpu_custom_call.1} parent=1 // pred_region
      %219 = vsyncadd [#allocation3], 0
      %s221 = sshll.u32 [#allocation2], 4
      %s222 = int_to_ptr.vmem [resolvable:$true] %s221
      %s223 = sshll.u32 %s4, 4
      %s224 = int_to_ptr.hbm [resolvable:$true] %s223
      %226 = dma.vmem_to_hbm [thread:$0]  %s222, 128, %s224, [#allocation3]
    $region25: #{tpu_custom_call.1} parent=1 // pred_fallthru
      _
    // Predicated region
    $region26: #{tpu_custom_call.1} parent=1 // pred_check
      _
    $region27: #{tpu_custom_call.1} parent=1 // pred_check_branch
      %228 = sbr.rel (0) target = $region29
    $region28: #{tpu_custom_call.1} parent=1 // pred_region
      %230 = dma.done [#allocation3], 128
    $region29: #{tpu_custom_call.1} parent=1 // pred_fallthru
      _
    %231 = vsyncpa [#allocation3], 1

</llo_original>
